<compile_context>
chip_gen: v7x
topology: tpu7x:2x2x1
jax: 0.10.0
libtpu: 0.0.40
codegen_flags: <defaults>
</compile_context>

<pallas_src>
import jax
import jax.numpy as jnp
from jax import lax
from jax.experimental import pallas as pl
from jax.experimental.pallas import tpu as pltpu


# Contract the last dim of both operands (A @ B^T), same pattern as Q @ K^T.
NT_DIMS = (((1,), (1,)), ((), ()))


def ranker_kernel(x_ref, idx_ref, w_ref, b_ref, embt_ref, o_ref):
    # x_ref:    (TB, D) bf16   dataset-feature tile
    # idx_ref:  (TB, 1) int32  ranker indices for this tile
    # w_ref:    (L, D)  bf16   linear weight, PyTorch (out, in) layout, resident
    # b_ref:    (L, 1)  f32    linear bias as a column, resident
    # embt_ref: (L, R)  bf16   embedding table transposed, resident
    # o_ref:    (1, TB) f32    lane-dense output row
    tb = x_ref.shape[0]
    _, r = embt_ref.shape

    # latent_dataset^T = W @ x^T  -> (L, TB), f32 accumulation on the MXU.
    lat_t = lax.dot_general(w_ref[...], x_ref[...], NT_DIMS,
                            preferred_element_type=jnp.float32)
    lat_t = lat_t + b_ref[...]                                   # (L,1) bcast over lanes

    # Fused embedding gather: one_hot(idx) (TB, R) matmul'd with emb^T (L, R)
    # in A @ B^T form so the gathered rows come out already transposed (L, TB).
    idx = idx_ref[...]                                           # (TB, 1) int32
    iota_r = lax.broadcasted_iota(jnp.int32, (tb, r), 1)         # (TB, R)
    one_hot = jnp.where(iota_r == idx, 1.0, 0.0).astype(jnp.bfloat16)
    emb_t = lax.dot_general(embt_ref[...], one_hot, NT_DIMS,
                            preferred_element_type=jnp.float32)  # (L, TB)

    # (latent_dataset * latent_ranker).sum(latent axis) -> lane-dense (1, TB).
    s = jnp.sum(lat_t * emb_t, axis=0, keepdims=True)            # (1, TB)
    o_ref[...] = jax.nn.sigmoid(s) * 2.0 + 1.0


def _round_up(n, m):
    return pl.cdiv(n, m) * m


def ranker_net_forward(dataset_features, ranker_index, w, b, emb_table,
                       *, block_b=512):
    """dataset_features: (B, D) f32; ranker_index: (B,) int;
    w: (L, D) f32 (PyTorch layout); b: (L,) f32; emb_table: (R, L) f32."""
    B, D = dataset_features.shape
    L = w.shape[0]
    R = emb_table.shape[0]

    tb = min(block_b, _round_up(B, 128))          # batch tile, multiple of 128
    b_pad = _round_up(B, tb)
    grid = (b_pad // tb,)

    # Wrapper-side glue: pad the batch tail, cast inputs to bf16 for DMA/MXU.
    x = jnp.pad(dataset_features, ((0, b_pad - B), (0, 0))).astype(jnp.bfloat16)
    idx = jnp.pad(ranker_index.astype(jnp.int32), (0, b_pad - B)).reshape(b_pad, 1)
    w_bf = w.astype(jnp.bfloat16)                                # (L, D)
    b_col = b.astype(jnp.float32).reshape(L, 1)                  # (L, 1)
    emb_t = emb_table.astype(jnp.bfloat16).T                     # (L, R), tiny

    out_row = pl.pallas_call(
        ranker_kernel,
        out_shape=jax.ShapeDtypeStruct((1, b_pad), jnp.float32),
        grid=grid,
        in_specs=[
            pl.BlockSpec((tb, D), lambda i: (i, 0)),   # x tile streams over batch
            pl.BlockSpec((tb, 1), lambda i: (i, 0)),   # idx tile
            pl.BlockSpec((L, D), lambda i: (0, 0)),    # W resident
            pl.BlockSpec((L, 1), lambda i: (0, 0)),    # bias resident
            pl.BlockSpec((L, R), lambda i: (0, 0)),    # emb table resident
        ],
        out_specs=pl.BlockSpec((1, tb), lambda i: (0, i)),
        compiler_params=pltpu.CompilerParams(
            dimension_semantics=("parallel",)),
    )(x, idx, w_bf, b_col, emb_t)

    return out_row[0, :B]                                        # (B,)


def init_params(key, dataset_sz, ranker_sz, latent_sz):
    """Deterministic init matching RankerNet.__init__ semantics."""
    k_w, k_b, k_e = jax.random.split(key, 3)
    # nn.init.kaiming_normal_ (fan_in mode, a=0): std = sqrt(2 / fan_in)
    std = (2.0 / dataset_sz) ** 0.5
    w = jax.random.normal(k_w, (latent_sz, dataset_sz), jnp.float32) * std
    # nn.Linear default bias init: U(-1/sqrt(fan_in), 1/sqrt(fan_in))
    bound = 1.0 / (dataset_sz ** 0.5)
    b = jax.random.uniform(k_b, (latent_sz,), jnp.float32, -bound, bound)
    # emb_init: U(-sc, sc), sc = 2 / (latent_sz + 1)
    sc = 2.0 / (latent_sz + 1)
    emb = jax.random.uniform(k_e, (ranker_sz, latent_sz), jnp.float32, -sc, sc)
    return w, b, emb


if __name__ == "__main__":
    dataset_sz, ranker_sz, latent_sz = 16, 10, 32
    batch = 8

    key = jax.random.PRNGKey(0)
    k_params, k_x, k_idx = jax.random.split(key, 3)

    w, b, emb_table = init_params(k_params, dataset_sz, ranker_sz, latent_sz)
    dataset_features = jax.random.normal(k_x, (batch, dataset_sz), jnp.float32)
    ranker_index = jax.random.randint(k_idx, (batch,), 0, ranker_sz, jnp.int32)

    out = ranker_net_forward(dataset_features, ranker_index, w, b, emb_table)
    out = jax.block_until_ready(out)

    # Pure-JAX reference of the same math, mirroring the bf16 input rounding
    # (f32 accumulation, exactly like the kernel's MXU path).
    x_bf = dataset_features.astype(jnp.bfloat16).astype(jnp.float32)
    w_bf = w.astype(jnp.bfloat16).astype(jnp.float32)
    emb_bf = emb_table.astype(jnp.bfloat16).astype(jnp.float32)
    latent_dataset = x_bf @ w_bf.T + b
    latent_ranker = jnp.take(emb_bf, ranker_index, axis=0)
    ref = jax.nn.sigmoid((latent_dataset * latent_ranker).sum(1)) * 2 + 1

    assert out.shape == (batch,)
    assert jnp.allclose(out, ref, atol=1e-4, rtol=1e-4)

    print("KERNEL_OK")
</pallas_src>

<mosaic_0001>
module attributes {stable_mosaic.version = 11 : i64} {
  func.func @ranker_kernel(%arg0: i32, %arg1: memref<128x16xbf16, #tpu.memory_space<vmem>>, %arg2: memref<128x1xi32, #tpu.memory_space<vmem>>, %arg3: memref<32x16xbf16, #tpu.memory_space<vmem>>, %arg4: memref<32x1xf32, #tpu.memory_space<vmem>>, %arg5: memref<32x10xbf16, #tpu.memory_space<vmem>>, %arg6: memref<1x128xf32, #tpu.memory_space<vmem>>) attributes {dimension_semantics = [#tpu.dimension_semantics<parallel>], iteration_bounds = array<i64: 1>, scalar_prefetch = 0 : i64, scratch_operands = 0 : i64, tpu.core_type = #tpu.core_type<tc>, window_params = [{transform_indices = @transform_0, window_bounds = array<i64: 128, 16>}, {transform_indices = @transform_1, window_bounds = array<i64: 128, 1>}, {pipeline_mode = #tpu.pipeline_mode<synchronous>, transform_indices = @transform_2, window_bounds = array<i64: 32, 16>}, {pipeline_mode = #tpu.pipeline_mode<synchronous>, transform_indices = @transform_3, window_bounds = array<i64: 32, 1>}, {pipeline_mode = #tpu.pipeline_mode<synchronous>, transform_indices = @transform_4, window_bounds = array<i64: 32, 10>}, {transform_indices = @transform_5, window_bounds = array<i64: 1, 128>}]} {
    %c0 = arith.constant 0 : index
    %c0_0 = arith.constant 0 : index
    %0 = vector.load %arg3[%c0, %c0_0] : memref<32x16xbf16, #tpu.memory_space<vmem>>, vector<32x16xbf16>
    %c0_1 = arith.constant 0 : index
    %c0_2 = arith.constant 0 : index
    %1 = vector.load %arg1[%c0_1, %c0_2] : memref<128x16xbf16, #tpu.memory_space<vmem>>, vector<128x16xbf16>
    %cst = arith.constant dense<0.000000e+00> : vector<32x128xf32>
    %2 = tpu.matmul %0, %1, %cst {dimension_numbers = #tpu.dot_dimension_numbers<[1], [1], [0], [0], [0, 0, 1, 0], [], []>} : vector<32x16xbf16>, vector<128x16xbf16>, vector<32x128xf32> -> vector<32x128xf32>
    %c0_3 = arith.constant 0 : index
    %c0_4 = arith.constant 0 : index
    %3 = vector.load %arg4[%c0_3, %c0_4] : memref<32x1xf32, #tpu.memory_space<vmem>>, vector<32x1xf32>
    %4 = vector.broadcast %3 : vector<32x1xf32> to vector<32x128xf32>
    %5 = arith.addf %2, %4 : vector<32x128xf32>
    %c0_5 = arith.constant 0 : index
    %c0_6 = arith.constant 0 : index
    %6 = vector.load %arg2[%c0_5, %c0_6] : memref<128x1xi32, #tpu.memory_space<vmem>>, vector<128x1xi32>
    %7 = tpu.iota {dimensions = array<i32: 1>} : vector<128x10xi32>
    %8 = vector.broadcast %6 : vector<128x1xi32> to vector<128x10xi32>
    %9 = arith.cmpi eq, %7, %8 : vector<128x10xi32>
    %cst_7 = arith.constant 1.000000e+00 : f32
    %cst_8 = arith.constant 0.000000e+00 : f32
    %10 = vector.broadcast %cst_7 : f32 to vector<128x10xf32>
    %11 = vector.broadcast %cst_8 : f32 to vector<128x10xf32>
    %12 = arith.select %9, %10, %11 : vector<128x10xi1>, vector<128x10xf32>
    %13 = arith.truncf %12 : vector<128x10xf32> to vector<128x10xbf16>
    %c0_9 = arith.constant 0 : index
    %c0_10 = arith.constant 0 : index
    %14 = vector.load %arg5[%c0_9, %c0_10] : memref<32x10xbf16, #tpu.memory_space<vmem>>, vector<32x10xbf16>
    %cst_11 = arith.constant dense<0.000000e+00> : vector<32x128xf32>
    %15 = tpu.matmul %14, %13, %cst_11 {dimension_numbers = #tpu.dot_dimension_numbers<[1], [1], [0], [0], [0, 0, 1, 0], [], []>} : vector<32x10xbf16>, vector<128x10xbf16>, vector<32x128xf32> -> vector<32x128xf32>
    %16 = arith.mulf %5, %15 : vector<32x128xf32>
    %cst_12 = arith.constant dense<0.000000e+00> : vector<128xf32>
    %17 = vector.multi_reduction <add>, %16, %cst_12 [0] : vector<32x128xf32> to vector<128xf32>
    %18 = vector.shape_cast %17 : vector<128xf32> to vector<1x128xf32>
    %19 = arith.negf %18 : vector<1x128xf32>
    %20 = math.exp %19 : vector<1x128xf32>
    %cst_13 = arith.constant 1.000000e+00 : f32
    %21 = vector.broadcast %cst_13 : f32 to vector<1x128xf32>
    %22 = arith.addf %21, %20 : vector<1x128xf32>
    %23 = arith.divf %21, %22 : vector<1x128xf32>
    %cst_14 = arith.constant 2.000000e+00 : f32
    %24 = vector.broadcast %cst_14 : f32 to vector<1x128xf32>
    %25 = arith.mulf %23, %24 : vector<1x128xf32>
    %cst_15 = arith.constant 1.000000e+00 : f32
    %26 = vector.broadcast %cst_15 : f32 to vector<1x128xf32>
    %27 = arith.addf %25, %26 : vector<1x128xf32>
    %c0_16 = arith.constant 0 : index
    %c0_17 = arith.constant 0 : index
    %28 = vector.load %arg6[%c0_16, %c0_17] : memref<1x128xf32, #tpu.memory_space<vmem>>, vector<1x128xf32>
    tpu.vector_store %arg6[%c0_16, %c0_17], %27 {strides = array<i32>} : memref<1x128xf32, #tpu.memory_space<vmem>>, vector<1x128xf32>,
    return
  }
  func.func @transform_0(%arg0: i32) -> (i32, i32) {
    %c0_i32 = arith.constant 0 : i32
    %c0_i32_0 = arith.constant 0 : i32
    return %arg0, %c0_i32 : i32, i32
  }
  func.func @transform_1(%arg0: i32) -> (i32, i32) {
    %c0_i32 = arith.constant 0 : i32
    %c0_i32_0 = arith.constant 0 : i32
    return %arg0, %c0_i32 : i32, i32
  }
  func.func @transform_2(%arg0: i32) -> (i32, i32) {
    %c0_i32 = arith.constant 0 : i32
    %c0_i32_0 = arith.constant 0 : i32
    %c0_i32_1 = arith.constant 0 : i32
    return %c0_i32, %c0_i32_0 : i32, i32
  }
  func.func @transform_3(%arg0: i32) -> (i32, i32) {
    %c0_i32 = arith.constant 0 : i32
    %c0_i32_0 = arith.constant 0 : i32
    %c0_i32_1 = arith.constant 0 : i32
    return %c0_i32, %c0_i32_0 : i32, i32
  }
  func.func @transform_4(%arg0: i32) -> (i32, i32) {
    %c0_i32 = arith.constant 0 : i32
    %c0_i32_0 = arith.constant 0 : i32
    %c0_i32_1 = arith.constant 0 : i32
    return %c0_i32, %c0_i32_0 : i32, i32
  }
  func.func @transform_5(%arg0: i32) -> (i32, i32) {
    %c0_i32 = arith.constant 0 : i32
    %c0_i32_0 = arith.constant 0 : i32
    return %c0_i32, %arg0 : i32, i32
  }
}

</mosaic_0001>

<llo_original>
// kernel: tpu_custom_call.1
$region0: #{tpu_custom_call.1}
  #allocation0 [shape = 'u32[]', space=smem, size = 0x4, offset = 0x4, fixed_abs, tag = 'smem constant byte address 0x4 - core index']
  #allocation1 [shape = 'u32[144,128]{1,0:T(1,128)}', space=vmem, size = 0x12000, scoped, tag = 'internal scratch']
  %s0 = inlined_call_operand.vmem [shape: bf16[128,16], index: 0, kind: input, shape index: {}]
  %s1 = inlined_call_operand.vmem [shape: s32[128,1], index: 1, kind: input, shape index: {}]
  %s2 = inlined_call_operand.vmem [shape: bf16[32,16], index: 2, kind: input, shape index: {}]
  %s3 = inlined_call_operand.vmem [shape: f32[32,1], index: 3, kind: input, shape index: {}]
  %s4 = inlined_call_operand.vmem [shape: bf16[32,10], index: 4, kind: input, shape index: {}]
  %s5 = inlined_call_operand.hbm [shape: f32[1,128], index: 5, kind: output, shape index: {}]
  %s6 = sld [smem:[#allocation0]]
  $region30: #{tpu_custom_call.1} parent=0
    _
  %s8 = ssub.s32 1, %s6
  %s9 = scalar_select 0, %s8, %s6
  $region1: #{tpu_custom_call.1} parent=0
    #allocation2 [shape = 'u8[512]{0}', space=vmem, size = 0x400, scoped, tag = 'output window, operand 0, single buffered']
    #allocation3 [shape = 's32[1]{0}', space=sflag, size = 0x4, scoped, tag = 'scoped memory for tpu_custom_call.1']
    %10 = vsyncpa [#allocation3], 0
    // Predicated region
    $region2: #{tpu_custom_call.1} parent=1 // pred_check
      _
    $region3: #{tpu_custom_call.1} parent=1 // pred_check_branch
      %12 = sbr.rel (0) target = $region5
    $region4: #{tpu_custom_call.1} parent=1 // pred_region
      _
    $region5: #{tpu_custom_call.1} parent=1 // pred_fallthru
      _
    // Predicated region
    $region6: #{tpu_custom_call.1} parent=1 // pred_check
      _
    $region7: #{tpu_custom_call.1} parent=1 // pred_check_branch
      %14 = sbr.rel (0) target = $region9
    $region8: #{tpu_custom_call.1} parent=1 // pred_region
      _
    $region9: #{tpu_custom_call.1} parent=1 // pred_fallthru
      _
    // Predicated region
    $region10: #{tpu_custom_call.1} parent=1 // pred_check
      _
    $region11: #{tpu_custom_call.1} parent=1 // pred_check_branch
      %16 = sbr.rel (0) target = $region13
    $region12: #{tpu_custom_call.1} parent=1 // pred_region
      _
    $region13: #{tpu_custom_call.1} parent=1 // pred_fallthru
      _
    // Predicated region
    $region14: #{tpu_custom_call.1} parent=1 // pred_check
      _
    $region15: #{tpu_custom_call.1} parent=1 // pred_check_branch
      %18 = sbr.rel (0) target = $region17
    $region16: #{tpu_custom_call.1} parent=1 // pred_region
      _
    $region17: #{tpu_custom_call.1} parent=1 // pred_fallthru
      _
    // Predicated region
    $region18: #{tpu_custom_call.1} parent=1 // pred_check
      _
    $region19: #{tpu_custom_call.1} parent=1 // pred_check_branch
      %20 = sbr.rel (0) target = $region21
    $region20: #{tpu_custom_call.1} parent=1 // pred_region
      _
    $region21: #{tpu_custom_call.1} parent=1 // pred_fallthru
      _
    %v22 = vld [vmem:[%s2] sm:$0xf]
    %v23 = vld [vmem:[%s2 + $0x4] sm:$0xf]
    %v24 = vld [vmem:[%s2 + $0x8] sm:$0xf]
    %v25 = vld [vmem:[%s2 + $0xc] sm:$0xf]
    %v26 = vld [vmem:[%s0] sm:$0xf]
    %v27 = vld [vmem:[%s0 + $0x4] sm:$0xf]
    %v28 = vld [vmem:[%s0 + $0x8] sm:$0xf]
    %v29 = vld [vmem:[%s0 + $0xc] sm:$0xf]
    %v30 = vld [vmem:[%s0 + $0x10] sm:$0xf]
    %v31 = vld [vmem:[%s0 + $0x14] sm:$0xf]
    %v32 = vld [vmem:[%s0 + $0x18] sm:$0xf]
    %v33 = vld [vmem:[%s0 + $0x1c] sm:$0xf]
    %v34 = vld [vmem:[%s0 + $0x20] sm:$0xf]
    %v35 = vld [vmem:[%s0 + $0x24] sm:$0xf]
    %v36 = vld [vmem:[%s0 + $0x28] sm:$0xf]
    %v37 = vld [vmem:[%s0 + $0x2c] sm:$0xf]
    %v38 = vld [vmem:[%s0 + $0x30] sm:$0xf]
    %v39 = vld [vmem:[%s0 + $0x34] sm:$0xf]
    %v40 = vld [vmem:[%s0 + $0x38] sm:$0xf]
    %v41 = vld [vmem:[%s0 + $0x3c] sm:$0xf]
    %v42 = vld [vmem:[%s3] sm:$0xff]
    %v43 = vld [vmem:[%s3 + $0x8] sm:$0xff]
    %v44 = vld [vmem:[%s3 + $0x10] sm:$0xff]
    %v45 = vld [vmem:[%s3 + $0x18] sm:$0xff]
    %47 = vset.pattern.permute.xlu0 0
    %48 = vperm.xlu0 %47, %v42
    %v49 = vpop.permute.xlu0 %48
    %52 = vset.pattern.permute.xlu0 0
    %53 = vperm.xlu0 %52, %v43
    %v54 = vpop.permute.xlu0 %53
    %57 = vset.pattern.permute.xlu0 0
    %58 = vperm.xlu0 %57, %v44
    %v59 = vpop.permute.xlu0 %58
    %62 = vset.pattern.permute.xlu0 0
    %63 = vperm.xlu0 %62, %v45
    %v64 = vpop.permute.xlu0 %63
    %v70 = vunpack.c.l.b16 %v22
    %v71 = vunpack.c.l.b16 %v23
    %v72 = vunpack.c.l.b16 %v24
    %v73 = vunpack.c.l.b16 %v25
    %v74 = vpack.c.b16 %v71, %v70
    %v75 = vpack.c.b16 %v73, %v72
    %v92 = vunpack.c.l.b16 %v26
    %v93 = vunpack.c.l.b16 %v27
    %v94 = vunpack.c.l.b16 %v28
    %v95 = vunpack.c.l.b16 %v29
    %v96 = vunpack.c.l.b16 %v30
    %v97 = vunpack.c.l.b16 %v31
    %v98 = vunpack.c.l.b16 %v32
    %v99 = vunpack.c.l.b16 %v33
    %v100 = vunpack.c.l.b16 %v34
    %v101 = vunpack.c.l.b16 %v35
    %v102 = vunpack.c.l.b16 %v36
    %v103 = vunpack.c.l.b16 %v37
    %v104 = vunpack.c.l.b16 %v38
    %v105 = vunpack.c.l.b16 %v39
    %v106 = vunpack.c.l.b16 %v40
    %v107 = vunpack.c.l.b16 %v41
    %v108 = vpack.c.b16 %v93, %v92
    %v109 = vpack.c.b16 %v95, %v94
    %v110 = vpack.c.b16 %v97, %v96
    %v111 = vpack.c.b16 %v99, %v98
    %v112 = vpack.c.b16 %v101, %v100
    %v113 = vpack.c.b16 %v103, %v102
    %v114 = vpack.c.b16 %v105, %v104
    %v115 = vpack.c.b16 %v107, %v106
    %vm116 = vcmask 130048
    %v118 = vsel %vm116, %v74, 0
    %v121 = vsel %vm116, %v75, 0
    %v124 = vsel %vm116, %v108, 0
    %v127 = vsel %vm116, %v109, 0
    %v130 = vsel %vm116, %v110, 0
    %v133 = vsel %vm116, %v111, 0
    %v136 = vsel %vm116, %v112, 0
    %v139 = vsel %vm116, %v113, 0
    %v142 = vsel %vm116, %v114, 0
    %v145 = vsel %vm116, %v115, 0
    %147 = vmatprep.subr.bf16.mxu0 0
    %148 = vmatpush1.bf16.xpose.msra.mxu0 %v124
    %149 = vmatprep.subr.bf16.mxu0 0
    %150 = vmatpush1.bf16.xpose.msra.mxu0 %v127
    %151 = vmatprep.subr.bf16.mxu0 0
    %152 = vmatpush1.bf16.xpose.msra.mxu0 %v130
    %153 = vmatprep.subr.bf16.mxu0 0
    %154 = vmatpush1.bf16.xpose.msra.mxu0 %v133
    %155 = vmatprep.subr.bf16.mxu0 0
    %156 = vmatpush1.bf16.xpose.msra.mxu0 %v136
    %157 = vmatprep.subr.bf16.mxu0 0
    %158 = vmatpush1.bf16.xpose.msra.mxu0 %v139
    %159 = vmatprep.subr.bf16.mxu0 0
    %160 = vmatpush1.bf16.xpose.msra.mxu0 %v142
    %161 = vmatprep.subr.bf16.mxu0 0
    %162 = vmatpush1.bf16.xpose.msra.mxu0 %v145
    %163 = vmatprep.subr.bf16.mxu0 0
    %164 = vmatpush1.bf16.xpose.msra.mxu0 0
    %165 = vmatprep.subr.bf16.mxu0 0
    %166 = vmatpush1.bf16.xpose.msra.mxu0 0
    %167 = vmatprep.subr.bf16.mxu0 0
    %168 = vmatpush1.bf16.xpose.msra.mxu0 0
    %169 = vmatprep.subr.bf16.mxu0 0
    %170 = vmatpush1.bf16.xpose.msra.mxu0 0
    %171 = vmatprep.subr.bf16.mxu0 0
    %172 = vmatpush1.bf16.xpose.msra.mxu0 0
    %173 = vmatprep.subr.bf16.mxu0 0
    %174 = vmatpush1.bf16.xpose.msra.mxu0 0
    %175 = vmatprep.subr.bf16.mxu0 0
    %176 = vmatpush1.bf16.xpose.msra.mxu0 0
    %177 = vmatprep.subr.bf16.mxu0 0
    %178 = vmatpush1.bf16.xpose.msra.mxu0 0
    %179 = vmatprep.mubr.bf16.mxu0 0
    %180 = vmatmul.mubr.bf16.gmra.mrb[0].mxu0 %v118
    %v181 = vpop.f32.mrb[0].mxu0
    %v182 = vadd.f32 %v49, %v181
    %v183 = vpop.f32.mrb[0].mxu0
    %v184 = vpop.f32.mrb[0].mxu0
    %v185 = vadd.f32 %v54, %v184
    %v186 = vpop.f32.mrb[0].mxu0
    %187 = vmatprep.mubr.bf16.mxu0 0
    %188 = vmatmul.mubr.bf16.gmra.mrb[0].mxu0 %v121
    %v189 = vpop.f32.mrb[0].mxu0
    %v190 = vadd.f32 %v59, %v189
    %v191 = vpop.f32.mrb[0].mxu0
    %v192 = vpop.f32.mrb[0].mxu0
    %v193 = vadd.f32 %v64, %v192
    %v194 = vpop.f32.mrb[0].mxu0
    %195 = vdwg.mxu0
    %v196 = vld [vmem:[%s1] sm:$0xff]
    %v197 = vld [vmem:[%s1 + $0x8] sm:$0xff]
    %v198 = vld [vmem:[%s1 + $0x10] sm:$0xff]
    %v199 = vld [vmem:[%s1 + $0x18] sm:$0xff]
    %v200 = vld [vmem:[%s1 + $0x20] sm:$0xff]
    %v201 = vld [vmem:[%s1 + $0x28] sm:$0xff]
    %v202 = vld [vmem:[%s1 + $0x30] sm:$0xff]
    %v203 = vld [vmem:[%s1 + $0x38] sm:$0xff]
    %v204 = vld [vmem:[%s1 + $0x40] sm:$0xff]
    %v205 = vld [vmem:[%s1 + $0x48] sm:$0xff]
    %v206 = vld [vmem:[%s1 + $0x50] sm:$0xff]
    %v207 = vld [vmem:[%s1 + $0x58] sm:$0xff]
    %v208 = vld [vmem:[%s1 + $0x60] sm:$0xff]
    %v209 = vld [vmem:[%s1 + $0x68] sm:$0xff]
    %v210 = vld [vmem:[%s1 + $0x70] sm:$0xff]
    %v211 = vld [vmem:[%s1 + $0x78] sm:$0xff]
    %v212 = vlaneseq
    %v213 = vand.u32 %v212, 127
    %214 = vset.pattern.permute.xlu0 0
    %215 = vperm.xlu0 %214, %v196
    %v216 = vpop.permute.xlu0 %215
    %217 = vset.pattern.permute.xlu0 0
    %218 = vperm.xlu0 %217, %v197
    %v219 = vpop.permute.xlu0 %218
    %220 = vset.pattern.permute.xlu0 0
    %221 = vperm.xlu0 %220, %v198
    %v222 = vpop.permute.xlu0 %221
    %223 = vset.pattern.permute.xlu0 0
    %224 = vperm.xlu0 %223, %v199
    %v225 = vpop.permute.xlu0 %224
    %226 = vset.pattern.permute.xlu0 0
    %227 = vperm.xlu0 %226, %v200
    %v228 = vpop.permute.xlu0 %227
    %229 = vset.pattern.permute.xlu0 0
    %230 = vperm.xlu0 %229, %v201
    %v231 = vpop.permute.xlu0 %230
    %232 = vset.pattern.permute.xlu0 0
    %233 = vperm.xlu0 %232, %v202
    %v234 = vpop.permute.xlu0 %233
    %235 = vset.pattern.permute.xlu0 0
    %236 = vperm.xlu0 %235, %v203
    %v237 = vpop.permute.xlu0 %236
    %238 = vset.pattern.permute.xlu0 0
    %239 = vperm.xlu0 %238, %v204
    %v240 = vpop.permute.xlu0 %239
    %241 = vset.pattern.permute.xlu0 0
    %242 = vperm.xlu0 %241, %v205
    %v243 = vpop.permute.xlu0 %242
    %244 = vset.pattern.permute.xlu0 0
    %245 = vperm.xlu0 %244, %v206
    %v246 = vpop.permute.xlu0 %245
    %247 = vset.pattern.permute.xlu0 0
    %248 = vperm.xlu0 %247, %v207
    %v249 = vpop.permute.xlu0 %248
    %250 = vset.pattern.permute.xlu0 0
    %251 = vperm.xlu0 %250, %v208
    %v252 = vpop.permute.xlu0 %251
    %253 = vset.pattern.permute.xlu0 0
    %254 = vperm.xlu0 %253, %v209
    %v255 = vpop.permute.xlu0 %254
    %256 = vset.pattern.permute.xlu0 0
    %257 = vperm.xlu0 %256, %v210
    %v258 = vpop.permute.xlu0 %257
    %259 = vset.pattern.permute.xlu0 0
    %260 = vperm.xlu0 %259, %v211
    %v261 = vpop.permute.xlu0 %260
    %vm262 = vcmp.eq.s32.totalorder %v213, %v216
    %vm263 = vcmp.eq.s32.totalorder %v213, %v219
    %vm264 = vcmp.eq.s32.totalorder %v213, %v222
    %vm265 = vcmp.eq.s32.totalorder %v213, %v225
    %vm266 = vcmp.eq.s32.totalorder %v213, %v228
    %vm267 = vcmp.eq.s32.totalorder %v213, %v231
    %vm268 = vcmp.eq.s32.totalorder %v213, %v234
    %vm269 = vcmp.eq.s32.totalorder %v213, %v237
    %vm270 = vcmp.eq.s32.totalorder %v213, %v240
    %vm271 = vcmp.eq.s32.totalorder %v213, %v243
    %vm272 = vcmp.eq.s32.totalorder %v213, %v246
    %vm273 = vcmp.eq.s32.totalorder %v213, %v249
    %vm274 = vcmp.eq.s32.totalorder %v213, %v252
    %vm275 = vcmp.eq.s32.totalorder %v213, %v255
    %vm276 = vcmp.eq.s32.totalorder %v213, %v258
    %vm277 = vcmp.eq.s32.totalorder %v213, %v261
    %v278 = vsel %vm262, 1.0, 0.0
    %v279 = vsel %vm263, 1.0, 0.0
    %v280 = vsel %vm264, 1.0, 0.0
    %v281 = vsel %vm265, 1.0, 0.0
    %v282 = vsel %vm266, 1.0, 0.0
    %v283 = vsel %vm267, 1.0, 0.0
    %v284 = vsel %vm268, 1.0, 0.0
    %v285 = vsel %vm269, 1.0, 0.0
    %v286 = vsel %vm270, 1.0, 0.0
    %v287 = vsel %vm271, 1.0, 0.0
    %v288 = vsel %vm272, 1.0, 0.0
    %v289 = vsel %vm273, 1.0, 0.0
    %v290 = vsel %vm274, 1.0, 0.0
    %v291 = vsel %vm275, 1.0, 0.0
    %v292 = vsel %vm276, 1.0, 0.0
    %v293 = vsel %vm277, 1.0, 0.0
    %v294 = vpack.c.bf16 %v279, %v278
    %v295 = vpack.c.bf16 %v281, %v280
    %v296 = vpack.c.bf16 %v283, %v282
    %v297 = vpack.c.bf16 %v285, %v284
    %v298 = vpack.c.bf16 %v287, %v286
    %v299 = vpack.c.bf16 %v289, %v288
    %v300 = vpack.c.bf16 %v291, %v290
    %v301 = vpack.c.bf16 %v293, %v292
    %v302 = vld [vmem:[%s4] sm:$0xf]
    %v303 = vld [vmem:[%s4 + $0x4] sm:$0xf]
    %v304 = vld [vmem:[%s4 + $0x8] sm:$0xf]
    %v305 = vld [vmem:[%s4 + $0xc] sm:$0xf]
    %v310 = vunpack.c.l.b16 %v302
    %v311 = vunpack.c.l.b16 %v303
    %v312 = vunpack.c.l.b16 %v304
    %v313 = vunpack.c.l.b16 %v305
    %v314 = vpack.c.b16 %v311, %v310
    %v315 = vpack.c.b16 %v313, %v312
    %vm316 = vcmask 80896
    %v318 = vsel %vm316, %v314, 0
    %v321 = vsel %vm316, %v315, 0
    %v324 = vsel %vm316, %v294, 0
    %v327 = vsel %vm316, %v295, 0
    %v330 = vsel %vm316, %v296, 0
    %v333 = vsel %vm316, %v297, 0
    %v336 = vsel %vm316, %v298, 0
    %v339 = vsel %vm316, %v299, 0
    %v342 = vsel %vm316, %v300, 0
    %v345 = vsel %vm316, %v301, 0
    %347 = vmatprep.subr.bf16.mxu0 0
    %348 = vmatpush1.bf16.xpose.msra.mxu0 %v324
    %349 = vmatprep.subr.bf16.mxu0 0
    %350 = vmatpush1.bf16.xpose.msra.mxu0 %v327
    %351 = vmatprep.subr.bf16.mxu0 0
    %352 = vmatpush1.bf16.xpose.msra.mxu0 %v330
    %353 = vmatprep.subr.bf16.mxu0 0
    %354 = vmatpush1.bf16.xpose.msra.mxu0 %v333
    %355 = vmatprep.subr.bf16.mxu0 0
    %356 = vmatpush1.bf16.xpose.msra.mxu0 %v336
    %357 = vmatprep.subr.bf16.mxu0 0
    %358 = vmatpush1.bf16.xpose.msra.mxu0 %v339
    %359 = vmatprep.subr.bf16.mxu0 0
    %360 = vmatpush1.bf16.xpose.msra.mxu0 %v342
    %361 = vmatprep.subr.bf16.mxu0 0
    %362 = vmatpush1.bf16.xpose.msra.mxu0 %v345
    %363 = vmatprep.subr.bf16.mxu0 0
    %364 = vmatpush1.bf16.xpose.msra.mxu0 0
    %365 = vmatprep.subr.bf16.mxu0 0
    %366 = vmatpush1.bf16.xpose.msra.mxu0 0
    %367 = vmatprep.subr.bf16.mxu0 0
    %368 = vmatpush1.bf16.xpose.msra.mxu0 0
    %369 = vmatprep.subr.bf16.mxu0 0
    %370 = vmatpush1.bf16.xpose.msra.mxu0 0
    %371 = vmatprep.subr.bf16.mxu0 0
    %372 = vmatpush1.bf16.xpose.msra.mxu0 0
    %373 = vmatprep.subr.bf16.mxu0 0
    %374 = vmatpush1.bf16.xpose.msra.mxu0 0
    %375 = vmatprep.subr.bf16.mxu0 0
    %376 = vmatpush1.bf16.xpose.msra.mxu0 0
    %377 = vmatprep.subr.bf16.mxu0 0
    %378 = vmatpush1.bf16.xpose.msra.mxu0 0
    %379 = vmatprep.mubr.bf16.mxu0 0
    %380 = vmatmul.mubr.bf16.gmra.mrb[0].mxu0 %v318
    %v381 = vpop.f32.mrb[0].mxu0
    %v382 = vadd.f32 0.0, %v381
    %v383 = vpop.f32.mrb[0].mxu0
    %v384 = vpop.f32.mrb[0].mxu0
    %v385 = vadd.f32 0.0, %v384
    %v386 = vpop.f32.mrb[0].mxu0
    %387 = vmatprep.mubr.bf16.mxu0 0
    %388 = vmatmul.mubr.bf16.gmra.mrb[0].mxu0 %v321
    %v389 = vpop.f32.mrb[0].mxu0
    %v390 = vadd.f32 0.0, %v389
    %v391 = vpop.f32.mrb[0].mxu0
    %v392 = vpop.f32.mrb[0].mxu0
    %v393 = vadd.f32 0.0, %v392
    %v394 = vpop.f32.mrb[0].mxu0
    %395 = vdwg.mxu0
    %v396 = vmul.f32 %v182, %v382
    %v397 = vmul.f32 %v185, %v385
    %v398 = vmul.f32 %v190, %v390
    %v399 = vmul.f32 %v193, %v393
    %v400 = vadd.f32 %v396, %v397
    %v401 = vadd.f32 %v400, %v398
    %v402 = vadd.f32 %v401, %v399
    %v403 = vrot.slane %v402, 4
    %v404 = vadd.f32 %v402, %v403
    %v405 = vrot.slane %v404, 2
    %v406 = vadd.f32 %v404, %v405
    %v407 = vrot.slane %v406, 1
    %v408 = vadd.f32 %v406, %v407
    %v409 = vxor.u32 %v408, 2147483648
    %v410 = vmul.f32 %v409, 1.442695
    %v411 = vpow.pop %v410
    %v412 = vadd.f32 %v411, 1.0
    %v413 = vrcp.pop %v412
    %v414 = vmul.f32 1.0, %v413
    %v415 = vmul.f32 %v414, 2.0
    %v416 = vadd.f32 %v415, 1.0
    %417 = vst [vmem:[#allocation2] sm:$0x1] %v416
    // Predicated region
    $region22: #{tpu_custom_call.1} parent=1 // pred_check
      _
    $region23: #{tpu_custom_call.1} parent=1 // pred_check_branch
      %419 = sbr.rel (0) target = $region25
    $region24: #{tpu_custom_call.1} parent=1 // pred_region
      %s421 = ssub.s32 16, 16
      %422 = vsyncadd [#allocation3], %s421
      %s424 = sshll.u32 [#allocation2], 4
      %s425 = int_to_ptr.vmem [resolvable:$true] %s424
      %427 = dma.vmem_to_hbm [thread:$0]  %s425, 16, %s5, [#allocation3]
    $region25: #{tpu_custom_call.1} parent=1 // pred_fallthru
      _
    // Predicated region
    $region26: #{tpu_custom_call.1} parent=1 // pred_check
      _
    $region27: #{tpu_custom_call.1} parent=1 // pred_check_branch
      %429 = sbr.rel (0) target = $region29
    $region28: #{tpu_custom_call.1} parent=1 // pred_region
      %430 = dma.done [#allocation3], 16
    $region29: #{tpu_custom_call.1} parent=1 // pred_fallthru
      _
    %431 = vsyncpa [#allocation3], 1

</llo_original>
